<compile_context>
chip_gen: v6e
topology: v6e:2x2x1
jax: 0.10.0
libtpu: 0.0.40
codegen_flags: <defaults>
</compile_context>

<pallas_src>
import functools

import jax
import jax.numpy as jnp
from jax.experimental import pallas as pl
from jax.experimental.pallas import tpu as pltpu


def _round_up(x, m):
    return ((x + m - 1) // m) * m


def _rbf_kernel(dist_ref, offset_ref, out_ref, *, coeff):
    # dist_ref:   (TILE_N, 1)   f32
    # offset_ref: (1, G_pad)    f32   (resident: same block every grid step)
    # out_ref:    (TILE_N, G_pad)
    d = dist_ref[...] - offset_ref[...]              # broadcast -> (TILE_N, G_pad)
    out_ref[...] = jnp.exp(coeff * d * d).astype(out_ref.dtype)


def rbf_layer(dist, *, low=0.0, high=10.0, num_gaussians=128,
              max_tile_n=1024, out_dtype=jnp.float32):
    """Pallas implementation of RBFLayer.forward.

    dist: any shape; flattened to (-1,) like dist.view(-1, 1) in torch.
    Returns (N, num_gaussians) in `out_dtype` (float32 by default).
    """
    offset = jnp.linspace(low, high, num_gaussians, dtype=jnp.float32)   # (G,)
    step = (high - low) / (num_gaussians - 1)
    coeff = -0.5 / (step ** 2)                                           # python float

    dist_col = jnp.asarray(dist, jnp.float32).reshape(-1, 1)             # (N, 1)
    n = dist_col.shape[0]

    # Keep the lane (last) dimension a multiple of 128 so output stores stay
    # unmasked/full-width. Default G=128 needs no padding.
    g_pad = _round_up(num_gaussians, 128)
    if g_pad != num_gaussians:
        offset_row = jnp.concatenate(
            [offset, jnp.full((g_pad - num_gaussians,), offset[-1], jnp.float32)]
        ).reshape(1, g_pad)
    else:
        offset_row = offset.reshape(1, g_pad)

    # Row tile: multiple of 8 sublanes, as large as reasonable. For big N this
    # gives many grid blocks (so both v7x TensorCores get work); for tiny N it
    # shrinks to a single exact block.
    tile_n = min(max_tile_n, _round_up(max(n, 1), 8))
    grid = (pl.cdiv(n, tile_n),)

    out = pl.pallas_call(
        functools.partial(_rbf_kernel, coeff=coeff),
        out_shape=jax.ShapeDtypeStruct((n, g_pad), out_dtype),
        grid_spec=pltpu.PrefetchScalarGridSpec(
            num_scalar_prefetch=0,
            grid=grid,
            in_specs=[
                pl.BlockSpec((tile_n, 1), lambda i: (i, 0)),
                # constant index_map -> offset block stays resident in VMEM
                pl.BlockSpec((1, g_pad), lambda i: (0, 0)),
            ],
            out_specs=pl.BlockSpec((tile_n, g_pad), lambda i: (i, 0)),
        ),
        compiler_params=pltpu.CompilerParams(
            dimension_semantics=("parallel",)),
    )(dist_col, offset_row)

    if g_pad != num_gaussians:
        out = out[:, :num_gaussians]
    return out


def _rbf_reference(dist, *, low=0.0, high=10.0, num_gaussians=128):
    offset = jnp.linspace(low, high, num_gaussians, dtype=jnp.float32)
    step = (high - low) / (num_gaussians - 1)
    coeff = -0.5 / (step ** 2)
    d = jnp.asarray(dist, jnp.float32).reshape(-1, 1) - offset.reshape(1, -1)
    return jnp.exp(coeff * d * d)


if __name__ == "__main__":
    key = jax.random.PRNGKey(0)
    k1, k2 = jax.random.split(key)

    # Small case (e.g. 16 edges of a molecular graph) -> single exact block.
    dist_small = jax.random.uniform(k1, (16,), jnp.float32, minval=0.0, maxval=10.0)
    out_small = jax.block_until_ready(rbf_layer(dist_small))
    ref_small = _rbf_reference(dist_small)
    assert out_small.shape == (16, 128), out_small.shape
    assert jnp.allclose(out_small, ref_small, atol=1e-5, rtol=1e-5), "mismatch (small)"

    # Non-divisible case -> exercises large tiles + masked partial last block,
    # with no post-kernel slice/copy of the output.
    dist_big = jax.random.uniform(k2, (2500,), jnp.float32, minval=0.0, maxval=10.0)
    out_big = jax.block_until_ready(rbf_layer(dist_big))
    ref_big = _rbf_reference(dist_big)
    assert out_big.shape == (2500, 128), out_big.shape
    assert jnp.allclose(out_big, ref_big, atol=1e-5, rtol=1e-5), "mismatch (big)"

    print("KERNEL_OK")
</pallas_src>

<mosaic_0001>
module attributes {stable_mosaic.version = 11 : i64} {
  func.func @_rbf_kernel(%arg0: i32, %arg1: memref<16x1xf32, #tpu.memory_space<vmem>>, %arg2: memref<1x128xf32, #tpu.memory_space<vmem>>, %arg3: memref<16x128xf32, #tpu.memory_space<vmem>>) attributes {dimension_semantics = [#tpu.dimension_semantics<parallel>], iteration_bounds = array<i64: 1>, scalar_prefetch = 0 : i64, scratch_operands = 0 : i64, tpu.core_type = #tpu.core_type<tc>, window_params = [{transform_indices = @transform_0, window_bounds = array<i64: 16, 1>}, {pipeline_mode = #tpu.pipeline_mode<synchronous>, transform_indices = @transform_1, window_bounds = array<i64: 1, 128>}, {transform_indices = @transform_2, window_bounds = array<i64: 16, 128>}]} {
    %c0 = arith.constant 0 : index
    %c0_0 = arith.constant 0 : index
    %0 = vector.load %arg1[%c0, %c0_0] : memref<16x1xf32, #tpu.memory_space<vmem>>, vector<16x1xf32>
    %c0_1 = arith.constant 0 : index
    %c0_2 = arith.constant 0 : index
    %1 = vector.load %arg2[%c0_1, %c0_2] : memref<1x128xf32, #tpu.memory_space<vmem>>, vector<1x128xf32>
    %2 = vector.broadcast %0 : vector<16x1xf32> to vector<16x128xf32>
    %3 = vector.broadcast %1 : vector<1x128xf32> to vector<16x128xf32>
    %4 = arith.subf %2, %3 : vector<16x128xf32>
    %cst = arith.constant -8.064500e+01 : f32
    %5 = vector.broadcast %cst : f32 to vector<16x128xf32>
    %6 = arith.mulf %5, %4 : vector<16x128xf32>
    %7 = arith.mulf %6, %4 : vector<16x128xf32>
    %8 = math.exp %7 : vector<16x128xf32>
    %c0_3 = arith.constant 0 : index
    %c0_4 = arith.constant 0 : index
    %9 = vector.load %arg3[%c0_3, %c0_4] : memref<16x128xf32, #tpu.memory_space<vmem>>, vector<16x128xf32>
    tpu.vector_store %arg3[%c0_3, %c0_4], %8 {strides = array<i32>} : memref<16x128xf32, #tpu.memory_space<vmem>>, vector<16x128xf32>,
    return
  }
  func.func @transform_0(%arg0: i32) -> (i32, i32) {
    %c0_i32 = arith.constant 0 : i32
    %c0_i32_0 = arith.constant 0 : i32
    return %arg0, %c0_i32 : i32, i32
  }
  func.func @transform_1(%arg0: i32) -> (i32, i32) {
    %c0_i32 = arith.constant 0 : i32
    %c0_i32_0 = arith.constant 0 : i32
    %c0_i32_1 = arith.constant 0 : i32
    return %c0_i32, %c0_i32_0 : i32, i32
  }
  func.func @transform_2(%arg0: i32) -> (i32, i32) {
    %c0_i32 = arith.constant 0 : i32
    %c0_i32_0 = arith.constant 0 : i32
    return %arg0, %c0_i32 : i32, i32
  }
}

</mosaic_0001>

<llo_original>
// kernel: tpu_custom_call.1
$region0: #{tpu_custom_call.1}
  #allocation0 [shape = 'u32[]', space=smem, size = 0x4, offset = 0x4, fixed_abs, tag = 'smem constant byte address 0x4 - core index']
  #allocation1 [shape = 'u32[144,128]{1,0:T(1,128)}', space=vmem, size = 0x12000, scoped, tag = 'internal scratch']
  %s0 = inlined_call_operand.vmem [shape: f32[16,1], index: 0, kind: input, shape index: {}]
  %s1 = inlined_call_operand.vmem [shape: f32[1,128], index: 1, kind: input, shape index: {}]
  %s2 = inlined_call_operand.hbm [shape: f32[16,128], index: 2, kind: output, shape index: {}]
  %s3 = sld [smem:[#allocation0]]
  $region18: #{tpu_custom_call.1} parent=0
    _
  %s5 = ssub.s32 1, %s3
  %s6 = scalar_select 0, %s5, %s3
  $region1: #{tpu_custom_call.1} parent=0
    #allocation2 [shape = 'u8[8192]{0}', space=vmem, size = 0x2000, scoped, tag = 'output window, operand 0, single buffered']
    #allocation3 [shape = 's32[1]{0}', space=sflag, size = 0x4, scoped, tag = 'scoped memory for tpu_custom_call.1']
    %7 = vsyncpa [#allocation3], 0
    // Predicated region
    $region2: #{tpu_custom_call.1} parent=1 // pred_check
      _
    $region3: #{tpu_custom_call.1} parent=1 // pred_check_branch
      %9 = sbr.rel (0) target = $region5
    $region4: #{tpu_custom_call.1} parent=1 // pred_region
      _
    $region5: #{tpu_custom_call.1} parent=1 // pred_fallthru
      _
    // Predicated region
    $region6: #{tpu_custom_call.1} parent=1 // pred_check
      _
    $region7: #{tpu_custom_call.1} parent=1 // pred_check_branch
      %11 = sbr.rel (0) target = $region9
    $region8: #{tpu_custom_call.1} parent=1 // pred_region
      _
    $region9: #{tpu_custom_call.1} parent=1 // pred_fallthru
      _
    %v12 = vld [vmem:[%s0] sm:$0xff]
    %v13 = vld [vmem:[%s0 + $0x8] sm:$0xff]
    %v14 = vld [vmem:[%s1] sm:$0x1]
    %16 = vset.pattern.permute.xlu0 0
    %17 = vperm.xlu0 %16, %v12
    %v18 = vpop.permute.xlu0 %17
    %21 = vset.pattern.permute.xlu0 0
    %22 = vperm.xlu0 %21, %v13
    %v23 = vpop.permute.xlu0 %22
    %v26 = vlaneseq
    %v27 = vshrl.u32 %v26, 7
    %v28 = vsub.s32 0, %v27
    %v29 = vrot.slane %v14, %v28
    %v31 = vsub.f32 %v18, %v29
    %v32 = vsub.f32 %v23, %v29
    %v33 = vmul.f32 %v31, -80.645
    %v34 = vmul.f32 %v32, -80.645
    %v35 = vmul.f32 %v33, %v31
    %v36 = vmul.f32 %v34, %v32
    %v37 = vmul.f32 %v35, 1.442695
    %v38 = vpow.pop %v37
    %v39 = vmul.f32 %v36, 1.442695
    %v40 = vpow.pop %v39
    %41 = vst [vmem:[#allocation2] sm:$0xff] %v38
    %42 = vst [vmem:[#allocation2 + $0x8] sm:$0xff] %v40
    // Predicated region
    $region10: #{tpu_custom_call.1} parent=1 // pred_check
      _
    $region11: #{tpu_custom_call.1} parent=1 // pred_check_branch
      %44 = sbr.rel (0) target = $region13
    $region12: #{tpu_custom_call.1} parent=1 // pred_region
      %s46 = ssub.s32 256, 256
      %47 = vsyncadd [#allocation3], %s46
      %s48 = sshll.u32 [#allocation2], 4
      %s49 = int_to_ptr.vmem [resolvable:$true] %s48
      %54 = dma.vmem_to_hbm [thread:$0]  %s49, 256, %s2, [#allocation3], 128, 128, 8
    $region13: #{tpu_custom_call.1} parent=1 // pred_fallthru
      _
    // Predicated region
    $region14: #{tpu_custom_call.1} parent=1 // pred_check
      _
    $region15: #{tpu_custom_call.1} parent=1 // pred_check_branch
      %56 = sbr.rel (0) target = $region17
    $region16: #{tpu_custom_call.1} parent=1 // pred_region
      %57 = dma.done [#allocation3], 256
    $region17: #{tpu_custom_call.1} parent=1 // pred_fallthru
      _
    %58 = vsyncpa [#allocation3], 1

</llo_original>
